<compile_context>
chip_gen: v7x
topology: tpu7x:2x2x1
jax: 0.10.0
libtpu: 0.0.40
codegen_flags: <defaults>
</compile_context>

<pallas_src>
import jax
import jax.numpy as jnp
from jax.experimental import pallas as pl
from jax.experimental.pallas import tpu as pltpu


# ----------------------------- kernel ---------------------------------------


def _linear_kernel(x_ref, w_ref, b_ref, o_ref):
    # grid = (M//tm, N//tn, K//tk); reduction axis (K) is last / "arbitrary".
    k = pl.program_id(2)

    @pl.when(k == 0)
    def _():
        # Fold the bias into the accumulator init: o = b + sum_k x_k @ w_k.
        o_ref[...] = jnp.broadcast_to(b_ref[...], o_ref.shape)

    # bf16 x bf16 MXU matmul, f32 accumulation directly into the
    # VMEM-resident output block.
    o_ref[...] += jnp.dot(
        x_ref[...].astype(jnp.bfloat16),
        w_ref[...],
        preferred_element_type=jnp.float32,
    )


# --------------------------- tiling helpers ---------------------------------


def _round_up(x, m):
    return ((x + m - 1) // m) * m


def _hw_vmem_budget():
    """VMEM budget with headroom, derived from the actual chip (trace-time)."""
    cap = 64 * 1024 * 1024  # conservative fallback (v7x-sized VMEM)
    try:
        cap = int(pltpu.get_tpu_info().vmem_capacity_bytes)
    except Exception:
        pass
    # 3/4 of physical, capped at 96 MiB: -> ~96 MiB on v5e/v6e, ~48 MiB on v7x.
    return min((cap * 3) // 4, 96 * 1024 * 1024)


def _choose_tiles(B, F, N, budget):
    """Pick (tm, tn, tk) and padded dims (Bp, Np, Fp).

    Targets are multiples of 256 (fills the 2x256x256 MXU on v6e/v7x; 256 is
    simply two passes of v5e's 4x128x128 MXU).  Dims larger than the target
    are padded up to a tile multiple, so a block can never exceed the target
    (no full-dimension fallback -> no VMEM-OOM tile)."""
    if budget >= 80 * 1024 * 1024:
        tm_t, tn_t, tk_t = 512, 2048, 2048  # v5e / v6e (128 MiB physical VMEM)
    else:
        tm_t, tn_t, tk_t = 256, 1024, 2048  # v7x (64 MiB physical VMEM)

    def pick(dim, target):
        if dim <= target:
            return dim, dim  # full-dim block (always legal), no padding
        return target, _round_up(dim, target)

    tm, Bp = pick(B, tm_t)
    tn, Np = pick(N, tn_t)
    tk, Fp = pick(F, tk_t)

    # Double-buffered x (f32) + weight (bf16) + bias, plus the resident f32
    # output block.  Shrink tk first if a pathological config overshoots.
    def footprint(tm_, tn_, tk_):
        return 2 * (tm_ * tk_ * 4 + tk_ * tn_ * 2 + tn_ * 4) + 2 * tm_ * tn_ * 4

    while footprint(tm, tn, tk) > budget and tk > 256 and tk % 2 == 0:
        tk //= 2
        Fp = _round_up(F, tk)

    # Megacore: guarantee >= 2 blocks on a "parallel" axis so both v7x
    # TensorCores get work.  Split N when both M and N collapse to one block.
    if Bp // tm == 1 and Np // tn == 1 and N > 128:
        cand = _round_up(-(-Np // 2), 128)
        if cand < Np:
            tn = cand
            Np = _round_up(N, tn)

    return (tm, tn, tk), (Bp, Np, Fp)


# ----------------------------- wrapper ---------------------------------------


@jax.jit
def linear_forward(x, w_t, b):
    """y = flatten(x) @ w_t + b   (float32 output).

    x   : (B, ...)  flattened to (B, F); cast to bf16 tile-by-tile in-kernel
    w_t : (F, N)    PyTorch weight (N, F) transposed; keep it persistently in
                    bf16 (cast ONCE at parameter setup, not per call)
    b   : (N,)      float32 bias
    """
    B = x.shape[0]
    x2 = x.reshape(B, -1)
    F = x2.shape[1]
    N = w_t.shape[1]

    if w_t.dtype != jnp.bfloat16:
        # Fallback for callers that did not pre-cast (costs an extra HBM pass
        # over the dominant operand; avoid by storing params in bf16).
        w_t = w_t.astype(jnp.bfloat16)

    budget = _hw_vmem_budget()
    (tm, tn, tk), (Bp, Np, Fp) = _choose_tiles(B, F, N, budget)

    # Zero-padding K is numerically inert; padded N columns / B rows are
    # sliced off after the kernel.
    if (Bp, Fp) != (B, F):
        x2 = jnp.pad(x2, ((0, Bp - B), (0, Fp - F)))
    if (Fp, Np) != (F, N):
        w_t = jnp.pad(w_t, ((0, Fp - F), (0, Np - N)))
    b2 = b.reshape(1, N).astype(jnp.float32)
    if Np != N:
        b2 = jnp.pad(b2, ((0, 0), (0, Np - N)))

    grid = (Bp // tm, Np // tn, Fp // tk)

    out = pl.pallas_call(
        _linear_kernel,
        out_shape=jax.ShapeDtypeStruct((Bp, Np), jnp.float32),
        grid_spec=pltpu.PrefetchScalarGridSpec(
            num_scalar_prefetch=0,
            grid=grid,
            in_specs=[
                pl.BlockSpec((tm, tk), lambda i, j, k: (i, k)),  # x tile
                pl.BlockSpec((tk, tn), lambda i, j, k: (k, j)),  # weight tile
                pl.BlockSpec((1, tn), lambda i, j, k: (0, j)),   # bias tile
            ],
            out_specs=pl.BlockSpec((tm, tn), lambda i, j, k: (i, j)),
        ),
        compiler_params=pltpu.CompilerParams(
            dimension_semantics=("parallel", "parallel", "arbitrary"),
            vmem_limit_bytes=int(budget),
        ),
    )(x2, w_t, b2)

    if (Bp, Np) != (B, N):
        out = out[:B, :N]
    return out


# ------------------------------- demo ----------------------------------------


if __name__ == "__main__":
    # Small shapes consistent with the module: image-like input flattened.
    B, C, H, W = 2, 4, 16, 16
    input_shape = C * H * W          # 1024
    latent_dim = 512                 # module default

    key = jax.random.PRNGKey(0)
    kx, kw, kb = jax.random.split(key, 3)

    x = jax.random.normal(kx, (B, C, H, W), dtype=jnp.float32)

    # Deterministic init mimicking nn.Linear's uniform(-1/sqrt(F), 1/sqrt(F)).
    bound = 1.0 / jnp.sqrt(jnp.float32(input_shape))
    weight = jax.random.uniform(
        kw, (latent_dim, input_shape), minval=-bound, maxval=bound,
        dtype=jnp.float32)                       # PyTorch layout (out, in)
    bias = jax.random.uniform(
        kb, (latent_dim,), minval=-bound, maxval=bound, dtype=jnp.float32)

    # Parameters live persistently in the layout/dtype the kernel streams:
    # pre-transposed to (F, N) and cast to bf16 ONCE (outside the jitted fwd).
    w_t_bf16 = jax.block_until_ready(weight.T.astype(jnp.bfloat16))

    y = linear_forward(x, w_t_bf16, bias)
    y = jax.block_until_ready(y)
    assert y.shape == (B, latent_dim)

    # Reference check in plain JAX using the same bf16-rounded operands the
    # kernel sees (f32 accumulation), plus a looser full-f32 sanity check.
    x_flat = x.reshape(B, -1)
    x_bf = x_flat.astype(jnp.bfloat16).astype(jnp.float32)
    w_bf = w_t_bf16.astype(jnp.float32)
    y_ref_bf16 = x_bf @ w_bf + bias
    y_ref_f32 = x_flat @ weight.T + bias

    assert jnp.allclose(y, y_ref_bf16, atol=1e-2, rtol=1e-2)
    assert jnp.allclose(y, y_ref_f32, atol=5e-2, rtol=5e-2)

    print("KERNEL_OK")
</pallas_src>

<mosaic_0001>
module attributes {stable_mosaic.version = 11 : i64} {
  func.func @_linear_kernel(%arg0: i32, %arg1: i32, %arg2: i32, %arg3: memref<2x1024xf32, #tpu.memory_space<vmem>>, %arg4: memref<1024x256xbf16, #tpu.memory_space<vmem>>, %arg5: memref<1x256xf32, #tpu.memory_space<vmem>>, %arg6: memref<2x256xf32, #tpu.memory_space<vmem>>) attributes {dimension_semantics = [#tpu.dimension_semantics<parallel>, #tpu.dimension_semantics<parallel>, #tpu.dimension_semantics<arbitrary>], iteration_bounds = array<i64: 1, 2, 1>, scalar_prefetch = 0 : i64, scratch_operands = 0 : i64, tpu.core_type = #tpu.core_type<tc>, window_params = [{transform_indices = @transform_0, window_bounds = array<i64: 2, 1024>}, {transform_indices = @transform_1, window_bounds = array<i64: 1024, 256>}, {transform_indices = @transform_2, window_bounds = array<i64: 1, 256>}, {transform_indices = @transform_3, window_bounds = array<i64: 2, 256>}]} {
    %c0_i32 = arith.constant 0 : i32
    %0 = arith.cmpi eq, %arg2, %c0_i32 : i32
    %1 = arith.extui %0 : i1 to i32
    %c0_i32_0 = arith.constant 0 : i32
    %2 = arith.cmpi ne, %1, %c0_i32_0 : i32
    scf.if %2 {
      %c0_8 = arith.constant 0 : index
      %c0_9 = arith.constant 0 : index
      %10 = vector.load %arg5[%c0_8, %c0_9] : memref<1x256xf32, #tpu.memory_space<vmem>>, vector<1x256xf32>
      %11 = vector.shape_cast %10 : vector<1x256xf32> to vector<1x256xf32>
      %12 = vector.broadcast %11 : vector<1x256xf32> to vector<2x256xf32>
      %c0_10 = arith.constant 0 : index
      %c0_11 = arith.constant 0 : index
      %13 = vector.load %arg6[%c0_10, %c0_11] : memref<2x256xf32, #tpu.memory_space<vmem>>, vector<2x256xf32>
      tpu.vector_store %arg6[%c0_10, %c0_11], %12 {strides = array<i32>} : memref<2x256xf32, #tpu.memory_space<vmem>>, vector<2x256xf32>,
    } else {
    }
    %c0 = arith.constant 0 : index
    %c0_1 = arith.constant 0 : index
    %3 = vector.load %arg6[%c0, %c0_1] : memref<2x256xf32, #tpu.memory_space<vmem>>, vector<2x256xf32>
    %c0_2 = arith.constant 0 : index
    %c0_3 = arith.constant 0 : index
    %4 = vector.load %arg3[%c0_2, %c0_3] : memref<2x1024xf32, #tpu.memory_space<vmem>>, vector<2x1024xf32>
    %5 = arith.truncf %4 : vector<2x1024xf32> to vector<2x1024xbf16>
    %c0_4 = arith.constant 0 : index
    %c0_5 = arith.constant 0 : index
    %6 = vector.load %arg4[%c0_4, %c0_5] : memref<1024x256xbf16, #tpu.memory_space<vmem>>, vector<1024x256xbf16>
    %cst = arith.constant dense<0.000000e+00> : vector<2x256xf32>
    %7 = tpu.matmul %5, %6, %cst {dimension_numbers = #tpu.dot_dimension_numbers<[1], [0], [0], [1], [0, 0, 1, 1], [], []>} : vector<2x1024xbf16>, vector<1024x256xbf16>, vector<2x256xf32> -> vector<2x256xf32>
    %8 = arith.addf %3, %7 : vector<2x256xf32>
    %c0_6 = arith.constant 0 : index
    %c0_7 = arith.constant 0 : index
    %9 = vector.load %arg6[%c0_6, %c0_7] : memref<2x256xf32, #tpu.memory_space<vmem>>, vector<2x256xf32>
    tpu.vector_store %arg6[%c0_6, %c0_7], %8 {strides = array<i32>} : memref<2x256xf32, #tpu.memory_space<vmem>>, vector<2x256xf32>,
    return
  }
  func.func @transform_0(%arg0: i32, %arg1: i32, %arg2: i32) -> (i32, i32) {
    %c0_i32 = arith.constant 0 : i32
    return %arg0, %arg2 : i32, i32
  }
  func.func @transform_1(%arg0: i32, %arg1: i32, %arg2: i32) -> (i32, i32) {
    %c0_i32 = arith.constant 0 : i32
    return %arg2, %arg1 : i32, i32
  }
  func.func @transform_2(%arg0: i32, %arg1: i32, %arg2: i32) -> (i32, i32) {
    %c0_i32 = arith.constant 0 : i32
    %c0_i32_0 = arith.constant 0 : i32
    return %c0_i32, %arg1 : i32, i32
  }
  func.func @transform_3(%arg0: i32, %arg1: i32, %arg2: i32) -> (i32, i32) {
    %c0_i32 = arith.constant 0 : i32
    return %arg0, %arg1 : i32, i32
  }
}

</mosaic_0001>

<llo_original>
// kernel: linear_forward.1
$region0: #{linear_forward.1}
  #allocation0 [shape = 'u32[]', space=smem, size = 0x4, offset = 0x4, fixed_abs, tag = 'smem constant byte address 0x4 - core index']
  #allocation1 [shape = 'u32[144,128]{1,0:T(1,128)}', space=vmem, size = 0x12000, scoped, tag = 'internal scratch']
  %s0 = inlined_call_operand.vmem [shape: f32[2,1024], index: 0, kind: input, shape index: {}]
  %s1 = inlined_call_operand.hbm [shape: bf16[1024,512], index: 1, kind: input, shape index: {}]
  %s2 = inlined_call_operand.vmem [shape: f32[1,512], index: 2, kind: input, shape index: {}]
  %s3 = inlined_call_operand.hbm [shape: f32[2,512], index: 3, kind: output, shape index: {}]
  %s4 = sld [smem:[#allocation0]]
  $region53: #{linear_forward.1} parent=0
    _
  %s6 = ssub.s32 1, %s4
  %s7 = scalar_select 0, %s6, %s4
  $region1: #{linear_forward.1} parent=0
    #allocation2 [shape = 'u8[1048576]{0}', space=vmem, size = 0x100000, scoped, tag = 'input window, operand 1']
    #allocation3 [shape = 's32[2]{0}', space=sflag, size = 0x8, scoped, tag = 'scoped memory for linear_forward.1']
    #allocation4 [shape = 's32[2]{0}', space=sflag, size = 0x8, scoped, tag = 'scoped memory for linear_forward.1']
    #allocation5 [shape = 'u8[4096]{0}', space=vmem, size = 0x1000, scoped, tag = 'output window, operand 0']
    %8 = vsyncpa [#allocation3], 0
    %s9 = scalar_lea.sflag [#allocation3], 1
    %10 = vsyncpa %s9, 0
    %11 = vsyncpa [#allocation4], 0
    %s12 = scalar_lea.sflag [#allocation4], 1
    %13 = vsyncpa %s12, 0
    loop: start=0, step=1, limit=4
    $region2: #{linear_forward.1} parent=1 // loop_pre_header
      _
    $region3: #{linear_forward.1} parent=1 // loop_header
      %s15 = sphi 0, %s19
      %p16 = scmp.ge.s32.totalorder %s15, 4
      %s22 = sphi 0, %s41
      %s23 = sphi 0, %s37
      %s24 = sphi 0, %s33
      %s25 = sphi 0, %s22
      %s26 = sphi 0, %s23
      %s27 = sphi 0, %s24
      %s28 = sphi 0, %s25
      %s29 = sphi 0, %s26
      %s30 = sphi 0, %s27
      %s46 = sphi 0, %s48
      %s49 = sphi 0, %s46
      %s50 = sphi 0, %s49
      %s66 = sphi 0, %s50
      %s74 = sphi 0, %s76
      %s77 = sphi 0, %s74
      %s78 = sphi 0, %s77
      %s94 = sphi 0, %s78
      %s100 = sphi 0, %s102
      %s103 = sphi 0, %s100
      %s104 = sphi 0, %s103
      %s120 = sphi 0, %s104
      %s128 = sphi 0, %s130
      %s131 = sphi 0, %s128
      %s132 = sphi 0, %s131
      %s148 = sphi 0, %s132
    $region4: #{linear_forward.1} parent=1 // loop_header_branch
      %18 = sbr.rel (%p16) target = $region8
    $region5: #{linear_forward.1} parent=1 // loop_body
      %s20 = ssub.s32 %s15, 1
      %s21 = ssub.s32 %s15, 2
      %s31 = sadd.s32 1, %s24
      %p32 = scmp.ge.s32.totalorder %s31, 1
      %s33 = scalar_select %p32, 0, %s31
      %s34 = sadd.s32 1, %s23
      %s35 = scalar_select %p32, %s34, %s23
      %p36 = scmp.ge.s32.totalorder %s35, 2
      %s37 = scalar_select %p36, 0, %s35
      %s38 = sadd.s32 1, %s22
      %s39 = scalar_select %p36, %s38, %s22
      %p40 = scmp.ge.s32.totalorder %s39, 1
      %s41 = scalar_select %p40, 0, %s39
      %s42 = ssub.s32 %s22, %s41
      %s43 = ssub.s32 %s24, %s33
      %s44 = sor.u32 %s42, %s43
      %p45 = scmp.eq.s32.totalorder %s44, 0
      %s47 = sadd.s32 %s46, 1
      %s48 = scalar_select %p45, %s46, %s47
      %p51 = pneg %p45
      %p52 = scmp.eq.s32.totalorder %s15, 1
      %p53 = por %p51, %p52
      %p54 = scmp.ne.s32.totalorder %s46, %s49
      %p55 = scmp.eq.s32.totalorder %s15, 0
      %p56 = por %p54, %p55
      %p57 = scmp.ne.s32.totalorder %s46, %s49
      %p58 = scmp.eq.s32.totalorder %s20, 1
      %p59 = por %p57, %p58
      %p60 = scmp.ne.s32.totalorder %s49, %s50
      %p61 = scmp.eq.s32.totalorder %s20, 0
      %p62 = por %p60, %p61
      %p63 = scmp.ne.s32.totalorder %s49, %s50
      %p64 = scmp.eq.s32.totalorder %s21, 1
      %p65 = por %p63, %p64
      %p67 = scmp.ne.s32.totalorder %s50, %s66
      %p68 = scmp.eq.s32.totalorder %s21, 0
      %p69 = por %p67, %p68
      %s70 = ssub.s32 %s24, %s33
      %s71 = ssub.s32 %s23, %s37
      %s72 = sor.u32 %s70, %s71
      %p73 = scmp.eq.s32.totalorder %s72, 0
      %s75 = sadd.s32 %s74, 1
      %s76 = scalar_select %p73, %s74, %s75
      %p79 = pneg %p73
      %p80 = scmp.eq.s32.totalorder %s15, 1
      %p81 = por %p79, %p80
      %p82 = scmp.ne.s32.totalorder %s74, %s77
      %p83 = scmp.eq.s32.totalorder %s15, 0
      %p84 = por %p82, %p83
      %p85 = scmp.ne.s32.totalorder %s74, %s77
      %p86 = scmp.eq.s32.totalorder %s20, 1
      %p87 = por %p85, %p86
      %p88 = scmp.ne.s32.totalorder %s77, %s78
      %p89 = scmp.eq.s32.totalorder %s20, 0
      %p90 = por %p88, %p89
      %p91 = scmp.ne.s32.totalorder %s77, %s78
      %p92 = scmp.eq.s32.totalorder %s21, 1
      %p93 = por %p91, %p92
      %p95 = scmp.ne.s32.totalorder %s78, %s94
      %p96 = scmp.eq.s32.totalorder %s21, 0
      %p97 = por %p95, %p96
      %s98 = ssub.s32 %s23, %s37
      %p99 = scmp.eq.s32.totalorder %s98, 0
      %s101 = sadd.s32 %s100, 1
      %s102 = scalar_select %p99, %s100, %s101
      %p105 = pneg %p99
      %p106 = scmp.eq.s32.totalorder %s15, 1
      %p107 = por %p105, %p106
      %p108 = scmp.ne.s32.totalorder %s100, %s103
      %p109 = scmp.eq.s32.totalorder %s15, 0
      %p110 = por %p108, %p109
      %p111 = scmp.ne.s32.totalorder %s100, %s103
      %p112 = scmp.eq.s32.totalorder %s20, 1
      %p113 = por %p111, %p112
      %p114 = scmp.ne.s32.totalorder %s103, %s104
      %p115 = scmp.eq.s32.totalorder %s20, 0
      %p116 = por %p114, %p115
      %p117 = scmp.ne.s32.totalorder %s103, %s104
      %p118 = scmp.eq.s32.totalorder %s21, 1
      %p119 = por %p117, %p118
      %p121 = scmp.ne.s32.totalorder %s104, %s120
      %p122 = scmp.eq.s32.totalorder %s21, 0
      %p123 = por %p121, %p122
      %s124 = ssub.s32 %s22, %s41
      %s125 = ssub.s32 %s23, %s37
      %s126 = sor.u32 %s124, %s125
      %p127 = scmp.eq.s32.totalorder %s126, 0
      %s129 = sadd.s32 %s128, 1
      %s130 = scalar_select %p127, %s128, %s129
      %p133 = pneg %p127
      %p134 = scmp.eq.s32.totalorder %s15, 1
      %p135 = por %p133, %p134
      %p136 = scmp.ne.s32.totalorder %s128, %s131
      %p137 = scmp.eq.s32.totalorder %s15, 0
      %p138 = por %p136, %p137
      %p139 = scmp.ne.s32.totalorder %s128, %s131
      %p140 = scmp.eq.s32.totalorder %s20, 1
      %p141 = por %p139, %p140
      %p142 = scmp.ne.s32.totalorder %s131, %s132
      %p143 = scmp.eq.s32.totalorder %s20, 0
      %p144 = por %p142, %p143
      %p145 = scmp.ne.s32.totalorder %s131, %s132
      %p146 = scmp.eq.s32.totalorder %s21, 1
      %p147 = por %p145, %p146
      %p149 = scmp.ne.s32.totalorder %s132, %s148
      %p150 = scmp.eq.s32.totalorder %s21, 0
      %p151 = por %p149, %p150
      %p152 = scmp.le.s32.totalorder 1, %s15
      %p153 = scmp.lt.s32.totalorder %s15, 3
      %p154 = pnand %p152, %p153
      %p155 = pneg %p154
      // Predicated region
      $region9: #{linear_forward.1} parent=5 // pred_check
        _
      $region10: #{linear_forward.1} parent=5 // pred_check_branch
        %157 = sbr.rel (%p154) target = $region12
      $region11: #{linear_forward.1} parent=5 // pred_region
        %s158 = ssub.s32 %s15, 1
        // Predicated region
        $region13: #{linear_forward.1} parent=11 // pred_check
          %p159 = pneg %p62
        $region14: #{linear_forward.1} parent=11 // pred_check_branch
          %161 = sbr.rel (%p159) target = $region16
        $region15: #{linear_forward.1} parent=11 // pred_region
          %s162 = smul.u32 8, %s27
          %p163 = scmp.lt.s32.totalorder %s25, 0
          %s164 = scalar_select %p163, %s25, 0
          %p165 = scmp.lt.s32.totalorder %s162, 7
          %s166 = scalar_select %p165, %s162, 7
          %s167 = smul.addr %s164, 8
          %s168 = sadd.s32 %s166, %s167
          %s169 = smul.addr %s168, 2
          %s170 = scalar_lea.vmem %s0, %s169
          %s171 = smul.u32 8, %s27
        $region16: #{linear_forward.1} parent=11 // pred_fallthru
          _
      $region12: #{linear_forward.1} parent=5 // pred_fallthru
        _
      %p172 = scmp.lt.s32.totalorder %s15, 2
      // Predicated region
      $region17: #{linear_forward.1} parent=5 // pred_check
        %p173 = pneg %p172
      $region18: #{linear_forward.1} parent=5 // pred_check_branch
        %175 = sbr.rel (%p173) target = $region20
      $region19: #{linear_forward.1} parent=5 // pred_region
        // Predicated region
        $region21: #{linear_forward.1} parent=19 // pred_check
          %p176 = pneg %p84
        $region22: #{linear_forward.1} parent=19 // pred_check_branch
          %178 = sbr.rel (%p176) target = $region24
        $region23: #{linear_forward.1} parent=19 // pred_region
          %s179 = sand.u32 %s74, 1
          %s180 = scalar_lea.sflag [#allocation3], %s179
          %s181 = sand.u32 %s74, 1
          %s182 = smul.addr %s181, 1024
          %s183 = scalar_lea.vmem [#allocation2], %s182
          %s184 = smul.u32 128, %s24
          %s185 = smul.u32 2, %s23
          %s187 = ssub.s32 16384, 16384
          %188 = vsyncadd %s180, %s187
          %s189 = smul.addr %s184, 4
          %s190 = sadd.s32 %s185, %s189
          %s191 = smul.addr %s190, 64
          %s192 = scalar_lea.hbm %s1, %s191
          %s193 = sshll.u32 %s183, 4
          %s194 = int_to_ptr.vmem [resolvable:$true] %s193
          %199 = dma.hbm_to_vmem [thread:$0]  %s192, 16384, %s194, %s180, 256, 128, 8
        $region24: #{linear_forward.1} parent=19 // pred_fallthru
          _
        // Predicated region
        $region25: #{linear_forward.1} parent=19 // pred_check
          %p200 = pneg %p110
        $region26: #{linear_forward.1} parent=19 // pred_check_branch
          %202 = sbr.rel (%p200) target = $region28
        $region27: #{linear_forward.1} parent=19 // pred_region
          %s203 = smul.u32 2, %s23
          %p204 = scmp.lt.s32.totalorder %s203, 3
          %s205 = scalar_select %p204, %s203, 3
          %s206 = scalar_lea.vmem %s2, %s205
          %s207 = smul.u32 2, %s23
        $region28: #{linear_forward.1} parent=19 // pred_fallthru
          _
      $region20: #{linear_forward.1} parent=5 // pred_fallthru
        _
      %p208 = scmp.le.s32.totalorder 1, %s15
      %p209 = scmp.lt.s32.totalorder %s15, 3
      %p210 = pnand %p208, %p209
      %p211 = pneg %p210
      // Predicated region
      $region29: #{linear_forward.1} parent=5 // pred_check
        _
      $region30: #{linear_forward.1} parent=5 // pred_check_branch
        %213 = sbr.rel (%p210) target = $region32
      $region31: #{linear_forward.1} parent=5 // pred_region
        %s214 = ssub.s32 %s15, 1
        %s215 = sand.u32 %s77, 1
        %s216 = scalar_lea.sflag [#allocation3], %s215
        %s217 = sand.u32 %s77, 1
        %s218 = smul.addr %s217, 1024
        %s219 = scalar_lea.vmem [#allocation2], %s218
        // Predicated region
        $region33: #{linear_forward.1} parent=31 // pred_check
          %p220 = pneg %p90
        $region34: #{linear_forward.1} parent=31 // pred_check_branch
          %222 = sbr.rel (%p220) target = $region36
        $region35: #{linear_forward.1} parent=31 // pred_region
          %223 = dma.done %s216, 16384
        $region36: #{linear_forward.1} parent=31 // pred_fallthru
          _
        %s224 = smul.u32 8, %s27
        %p225 = scmp.lt.s32.totalorder %s25, 0
        %s226 = scalar_select %p225, %s25, 0
        %p227 = scmp.lt.s32.totalorder %s224, 7
        %s228 = scalar_select %p227, %s224, 7
        %s229 = smul.addr %s226, 8
        %s230 = sadd.s32 %s228, %s229
        %s231 = smul.addr %s230, 2
        %s232 = scalar_lea.vmem %s0, %s231
        %p233 = pneg %p62
        %p234 = pneg %p59
        %s235 = sand.u32 %s77, 1
        %s236 = scalar_lea.sflag [#allocation3], %s235
        %s237 = sand.u32 %s77, 1
        %s238 = smul.addr %s237, 1024
        %s239 = scalar_lea.vmem [#allocation2], %s238
        %p240 = pneg %p90
        %p241 = pneg %p87
        %s242 = smul.u32 2, %s26
        %p243 = scmp.lt.s32.totalorder %s242, 3
        %s244 = scalar_select %p243, %s242, 3
        %s245 = scalar_lea.vmem %s2, %s244
        %p246 = pneg %p116
        %p247 = pneg %p113
        %p248 = pneg %p144
        %p249 = pneg %p141
        %s250 = sand.u32 %s131, 1
        %s251 = scalar_lea.sflag [#allocation4], %s250
        %s252 = sand.u32 %s131, 1
        %s253 = smul.addr %s252, 4
        %s254 = scalar_lea.vmem [#allocation5], %s253
        %s255 = smul.u32 8, %s27
        %p256 = scmp.lt.s32.totalorder %s25, 0
        %s257 = scalar_select %p256, %s25, 0
        %p258 = scmp.lt.s32.totalorder %s255, 7
        %s259 = scalar_select %p258, %s255, 7
        %s260 = smul.addr %s257, 8
        %s261 = sadd.s32 %s259, %s260
        %s262 = smul.addr %s261, 2
        %s263 = scalar_lea.vmem %s0, %s262
        %s264 = smul.u32 8, %s27
        %s265 = smul.u32 128, %s27
        %s266 = smul.u32 2, %s26
        %s267 = smul.u32 2, %s26
        %p268 = scmp.lt.s32.totalorder %s267, 3
        %s269 = scalar_select %p268, %s267, 3
        %s270 = scalar_lea.vmem %s2, %s269
        %s271 = smul.u32 2, %s26
        %s272 = smul.u32 2, %s26
        %p273 = scmp.eq.s32.totalorder %s27, 0
        // Predicated region
        $region37: #{linear_forward.1} parent=31 // pred_check
          %p274 = pneg %p273
        $region38: #{linear_forward.1} parent=31 // pred_check_branch
          %276 = sbr.rel (%p274) target = $region40
        $region39: #{linear_forward.1} parent=31 // pred_region
          %v277 = vld [vmem:[%s270] sm:$0x3]
          %v279 = vlaneseq
          %v280 = vshrl.u32 %v279, 7
          %v281 = vsub.s32 0, %v280
          %v282 = vrot.slane %v277, %v281
          %v283 = vlaneseq
          %v284 = vshrl.u32 %v283, 7
          %v285 = vsub.s32 1, %v284
          %v286 = vrot.slane %v277, %v285
          %v287 = vcombine.low %v282, %v286
          %v289 = vunpack.c.l.s4 1983009808
          %v290 = vunpack.c.0.s8 %v289
          %v291 = vlaneseq
          %v292 = vshrl.u32 %v291, 7
          %v293 = vsub.s32 %v290, %v292
          %v294 = vrot.slane %v287, %v293
          %296 = vst [vmem:[%s254] sm:$0xf] %v294
        $region40: #{linear_forward.1} parent=31 // pred_fallthru
          _
        %v297 = vld [vmem:[%s254] sm:$0xf]
        %v298 = vld [vmem:[%s263] sm:$0xff]
        %v299 = vld [vmem:[%s263 + $0x8] sm:$0xff]
        %v302 = vcombine.high %v298, %v298
        %v304 = vunpack.c.l.s4 1983009808
        %v305 = vunpack.c.0.s8 %v304
        %v306 = vlaneseq
        %v307 = vshrl.u32 %v306, 7
        %v308 = vsub.s32 %v305, %v307
        %v309 = vrot.slane %v298, %v308
        %v311 = vunpack.c.l.s4 1983009808
        %v312 = vunpack.c.0.s8 %v311
        %v313 = vlaneseq
        %v314 = vshrl.u32 %v313, 7
        %v315 = vsub.s32 %v312, %v314
        %v316 = vrot.slane %v302, %v315
        %v317 = vcombine.high %v309, %v309
        %v318 = vcombine.high %v316, %v316
        %v319 = vcombine.high %v299, %v299
        %v321 = vunpack.c.l.s4 1983009808
        %v322 = vunpack.c.0.s8 %v321
        %v323 = vlaneseq
        %v324 = vshrl.u32 %v323, 7
        %v325 = vsub.s32 %v322, %v324
        %v326 = vrot.slane %v299, %v325
        %v328 = vunpack.c.l.s4 1983009808
        %v329 = vunpack.c.0.s8 %v328
        %v330 = vlaneseq
        %v331 = vshrl.u32 %v330, 7
        %v332 = vsub.s32 %v329, %v331
        %v333 = vrot.slane %v319, %v332
        %v334 = vcombine.high %v326, %v326
        %v335 = vcombine.high %v333, %v333
        %v344 = vpack.c.bf16 %v309, %v309
        %v345 = vpack.c.bf16 %v317, %v317
        %v346 = vpack.c.bf16 %v316, %v316
        %v347 = vpack.c.bf16 %v318, %v318
        %v348 = vpack.c.bf16 %v326, %v326
        %v349 = vpack.c.bf16 %v334, %v334
        %v350 = vpack.c.bf16 %v333, %v333
        %v351 = vpack.c.bf16 %v335, %v335
        %v352 = vld [vmem:[%s219] sm:$0xff]
        %v353 = vld [vmem:[%s219 + $0x8] sm:$0xff]
        %v354 = vld [vmem:[%s219 + $0x10] sm:$0xff]
        %v355 = vld [vmem:[%s219 + $0x18] sm:$0xff]
        %v356 = vld [vmem:[%s219 + $0x20] sm:$0xff]
        %v357 = vld [vmem:[%s219 + $0x28] sm:$0xff]
        %v358 = vld [vmem:[%s219 + $0x30] sm:$0xff]
        %v359 = vld [vmem:[%s219 + $0x38] sm:$0xff]
        %v360 = vld [vmem:[%s219 + $0x40] sm:$0xff]
        %v361 = vld [vmem:[%s219 + $0x48] sm:$0xff]
        %v362 = vld [vmem:[%s219 + $0x50] sm:$0xff]
        %v363 = vld [vmem:[%s219 + $0x58] sm:$0xff]
        %v364 = vld [vmem:[%s219 + $0x60] sm:$0xff]
        %v365 = vld [vmem:[%s219 + $0x68] sm:$0xff]
        %v366 = vld [vmem:[%s219 + $0x70] sm:$0xff]
        %v367 = vld [vmem:[%s219 + $0x78] sm:$0xff]
        %v368 = vld [vmem:[%s219 + $0x80] sm:$0xff]
        %v369 = vld [vmem:[%s219 + $0x88] sm:$0xff]
        %v370 = vld [vmem:[%s219 + $0x90] sm:$0xff]
        %v371 = vld [vmem:[%s219 + $0x98] sm:$0xff]
        %v372 = vld [vmem:[%s219 + $0xa0] sm:$0xff]
        %v373 = vld [vmem:[%s219 + $0xa8] sm:$0xff]
        %v374 = vld [vmem:[%s219 + $0xb0] sm:$0xff]
        %v375 = vld [vmem:[%s219 + $0xb8] sm:$0xff]
        %v376 = vld [vmem:[%s219 + $0xc0] sm:$0xff]
        %v377 = vld [vmem:[%s219 + $0xc8] sm:$0xff]
        %v378 = vld [vmem:[%s219 + $0xd0] sm:$0xff]
        %v379 = vld [vmem:[%s219 + $0xd8] sm:$0xff]
        %v380 = vld [vmem:[%s219 + $0xe0] sm:$0xff]
        %v381 = vld [vmem:[%s219 + $0xe8] sm:$0xff]
        %v382 = vld [vmem:[%s219 + $0xf0] sm:$0xff]
        %v383 = vld [vmem:[%s219 + $0xf8] sm:$0xff]
        %v384 = vld [vmem:[%s219 + $0x100] sm:$0xff]
        %v385 = vld [vmem:[%s219 + $0x108] sm:$0xff]
        %v386 = vld [vmem:[%s219 + $0x110] sm:$0xff]
        %v387 = vld [vmem:[%s219 + $0x118] sm:$0xff]
        %v388 = vld [vmem:[%s219 + $0x120] sm:$0xff]
        %v389 = vld [vmem:[%s219 + $0x128] sm:$0xff]
        %v390 = vld [vmem:[%s219 + $0x130] sm:$0xff]
        %v391 = vld [vmem:[%s219 + $0x138] sm:$0xff]
        %v392 = vld [vmem:[%s219 + $0x140] sm:$0xff]
        %v393 = vld [vmem:[%s219 + $0x148] sm:$0xff]
        %v394 = vld [vmem:[%s219 + $0x150] sm:$0xff]
        %v395 = vld [vmem:[%s219 + $0x158] sm:$0xff]
        %v396 = vld [vmem:[%s219 + $0x160] sm:$0xff]
        %v397 = vld [vmem:[%s219 + $0x168] sm:$0xff]
        %v398 = vld [vmem:[%s219 + $0x170] sm:$0xff]
        %v399 = vld [vmem:[%s219 + $0x178] sm:$0xff]
        %v400 = vld [vmem:[%s219 + $0x180] sm:$0xff]
        %v401 = vld [vmem:[%s219 + $0x188] sm:$0xff]
        %v402 = vld [vmem:[%s219 + $0x190] sm:$0xff]
        %v403 = vld [vmem:[%s219 + $0x198] sm:$0xff]
        %v404 = vld [vmem:[%s219 + $0x1a0] sm:$0xff]
        %v405 = vld [vmem:[%s219 + $0x1a8] sm:$0xff]
        %v406 = vld [vmem:[%s219 + $0x1b0] sm:$0xff]
        %v407 = vld [vmem:[%s219 + $0x1b8] sm:$0xff]
        %v408 = vld [vmem:[%s219 + $0x1c0] sm:$0xff]
        %v409 = vld [vmem:[%s219 + $0x1c8] sm:$0xff]
        %v410 = vld [vmem:[%s219 + $0x1d0] sm:$0xff]
        %v411 = vld [vmem:[%s219 + $0x1d8] sm:$0xff]
        %v412 = vld [vmem:[%s219 + $0x1e0] sm:$0xff]
        %v413 = vld [vmem:[%s219 + $0x1e8] sm:$0xff]
        %v414 = vld [vmem:[%s219 + $0x1f0] sm:$0xff]
        %v415 = vld [vmem:[%s219 + $0x1f8] sm:$0xff]
        %v416 = vld [vmem:[%s219 + $0x200] sm:$0xff]
        %v417 = vld [vmem:[%s219 + $0x208] sm:$0xff]
        %v418 = vld [vmem:[%s219 + $0x210] sm:$0xff]
        %v419 = vld [vmem:[%s219 + $0x218] sm:$0xff]
        %v420 = vld [vmem:[%s219 + $0x220] sm:$0xff]
        %v421 = vld [vmem:[%s219 + $0x228] sm:$0xff]
        %v422 = vld [vmem:[%s219 + $0x230] sm:$0xff]
        %v423 = vld [vmem:[%s219 + $0x238] sm:$0xff]
        %v424 = vld [vmem:[%s219 + $0x240] sm:$0xff]
        %v425 = vld [vmem:[%s219 + $0x248] sm:$0xff]
        %v426 = vld [vmem:[%s219 + $0x250] sm:$0xff]
        %v427 = vld [vmem:[%s219 + $0x258] sm:$0xff]
        %v428 = vld [vmem:[%s219 + $0x260] sm:$0xff]
        %v429 = vld [vmem:[%s219 + $0x268] sm:$0xff]
        %v430 = vld [vmem:[%s219 + $0x270] sm:$0xff]
        %v431 = vld [vmem:[%s219 + $0x278] sm:$0xff]
        %v432 = vld [vmem:[%s219 + $0x280] sm:$0xff]
        %v433 = vld [vmem:[%s219 + $0x288] sm:$0xff]
        %v434 = vld [vmem:[%s219 + $0x290] sm:$0xff]
        %v435 = vld [vmem:[%s219 + $0x298] sm:$0xff]
        %v436 = vld [vmem:[%s219 + $0x2a0] sm:$0xff]
        %v437 = vld [vmem:[%s219 + $0x2a8] sm:$0xff]
        %v438 = vld [vmem:[%s219 + $0x2b0] sm:$0xff]
        %v439 = vld [vmem:[%s219 + $0x2b8] sm:$0xff]
        %v440 = vld [vmem:[%s219 + $0x2c0] sm:$0xff]
        %v441 = vld [vmem:[%s219 + $0x2c8] sm:$0xff]
        %v442 = vld [vmem:[%s219 + $0x2d0] sm:$0xff]
        %v443 = vld [vmem:[%s219 + $0x2d8] sm:$0xff]
        %v444 = vld [vmem:[%s219 + $0x2e0] sm:$0xff]
        %v445 = vld [vmem:[%s219 + $0x2e8] sm:$0xff]
        %v446 = vld [vmem:[%s219 + $0x2f0] sm:$0xff]
        %v447 = vld [vmem:[%s219 + $0x2f8] sm:$0xff]
        %v448 = vld [vmem:[%s219 + $0x300] sm:$0xff]
        %v449 = vld [vmem:[%s219 + $0x308] sm:$0xff]
        %v450 = vld [vmem:[%s219 + $0x310] sm:$0xff]
        %v451 = vld [vmem:[%s219 + $0x318] sm:$0xff]
        %v452 = vld [vmem:[%s219 + $0x320] sm:$0xff]
        %v453 = vld [vmem:[%s219 + $0x328] sm:$0xff]
        %v454 = vld [vmem:[%s219 + $0x330] sm:$0xff]
        %v455 = vld [vmem:[%s219 + $0x338] sm:$0xff]
        %v456 = vld [vmem:[%s219 + $0x340] sm:$0xff]
        %v457 = vld [vmem:[%s219 + $0x348] sm:$0xff]
        %v458 = vld [vmem:[%s219 + $0x350] sm:$0xff]
        %v459 = vld [vmem:[%s219 + $0x358] sm:$0xff]
        %v460 = vld [vmem:[%s219 + $0x360] sm:$0xff]
        %v461 = vld [vmem:[%s219 + $0x368] sm:$0xff]
        %v462 = vld [vmem:[%s219 + $0x370] sm:$0xff]
        %v463 = vld [vmem:[%s219 + $0x378] sm:$0xff]
        %v464 = vld [vmem:[%s219 + $0x380] sm:$0xff]
        %v465 = vld [vmem:[%s219 + $0x388] sm:$0xff]
        %v466 = vld [vmem:[%s219 + $0x390] sm:$0xff]
        %v467 = vld [vmem:[%s219 + $0x398] sm:$0xff]
        %v468 = vld [vmem:[%s219 + $0x3a0] sm:$0xff]
        %v469 = vld [vmem:[%s219 + $0x3a8] sm:$0xff]
        %v470 = vld [vmem:[%s219 + $0x3b0] sm:$0xff]
        %v471 = vld [vmem:[%s219 + $0x3b8] sm:$0xff]
        %v472 = vld [vmem:[%s219 + $0x3c0] sm:$0xff]
        %v473 = vld [vmem:[%s219 + $0x3c8] sm:$0xff]
        %v474 = vld [vmem:[%s219 + $0x3d0] sm:$0xff]
        %v475 = vld [vmem:[%s219 + $0x3d8] sm:$0xff]
        %v476 = vld [vmem:[%s219 + $0x3e0] sm:$0xff]
        %v477 = vld [vmem:[%s219 + $0x3e8] sm:$0xff]
        %v478 = vld [vmem:[%s219 + $0x3f0] sm:$0xff]
        %v479 = vld [vmem:[%s219 + $0x3f8] sm:$0xff]
        %v608 = vunpack.c.l.b16 %v352
        %v609 = vunpack.c.h.b16 %v352
        %v610 = vunpack.c.l.b16 %v353
        %v611 = vunpack.c.h.b16 %v353
        %v612 = vunpack.c.l.b16 %v354
        %v613 = vunpack.c.h.b16 %v354
        %v614 = vunpack.c.l.b16 %v355
        %v615 = vunpack.c.h.b16 %v355
        %v616 = vunpack.c.l.b16 %v356
        %v617 = vunpack.c.h.b16 %v356
        %v618 = vunpack.c.l.b16 %v357
        %v619 = vunpack.c.h.b16 %v357
        %v620 = vunpack.c.l.b16 %v358
        %v621 = vunpack.c.h.b16 %v358
        %v622 = vunpack.c.l.b16 %v359
        %v623 = vunpack.c.h.b16 %v359
        %v624 = vunpack.c.l.b16 %v360
        %v625 = vunpack.c.h.b16 %v360
        %v626 = vunpack.c.l.b16 %v361
        %v627 = vunpack.c.h.b16 %v361
        %v628 = vunpack.c.l.b16 %v362
        %v629 = vunpack.c.h.b16 %v362
        %v630 = vunpack.c.l.b16 %v363
        %v631 = vunpack.c.h.b16 %v363
        %v632 = vunpack.c.l.b16 %v364
        %v633 = vunpack.c.h.b16 %v364
        %v634 = vunpack.c.l.b16 %v365
        %v635 = vunpack.c.h.b16 %v365
        %v636 = vunpack.c.l.b16 %v366
        %v637 = vunpack.c.h.b16 %v366
        %v638 = vunpack.c.l.b16 %v367
        %v639 = vunpack.c.h.b16 %v367
        %v640 = vunpack.c.l.b16 %v368
        %v641 = vunpack.c.h.b16 %v368
        %v642 = vunpack.c.l.b16 %v369
        %v643 = vunpack.c.h.b16 %v369
        %v644 = vunpack.c.l.b16 %v370
        %v645 = vunpack.c.h.b16 %v370
        %v646 = vunpack.c.l.b16 %v371
        %v647 = vunpack.c.h.b16 %v371
        %v648 = vunpack.c.l.b16 %v372
        %v649 = vunpack.c.h.b16 %v372
        %v650 = vunpack.c.l.b16 %v373
        %v651 = vunpack.c.h.b16 %v373
        %v652 = vunpack.c.l.b16 %v374
        %v653 = vunpack.c.h.b16 %v374
        %v654 = vunpack.c.l.b16 %v375
        %v655 = vunpack.c.h.b16 %v375
        %v656 = vunpack.c.l.b16 %v376
        %v657 = vunpack.c.h.b16 %v376
        %v658 = vunpack.c.l.b16 %v377
        %v659 = vunpack.c.h.b16 %v377
        %v660 = vunpack.c.l.b16 %v378
        %v661 = vunpack.c.h.b16 %v378
        %v662 = vunpack.c.l.b16 %v379
        %v663 = vunpack.c.h.b16 %v379
        %v664 = vunpack.c.l.b16 %v380
        %v665 = vunpack.c.h.b16 %v380
        %v666 = vunpack.c.l.b16 %v381
        %v667 = vunpack.c.h.b16 %v381
        %v668 = vunpack.c.l.b16 %v382
        %v669 = vunpack.c.h.b16 %v382
        %v670 = vunpack.c.l.b16 %v383
        %v671 = vunpack.c.h.b16 %v383
        %v672 = vunpack.c.l.b16 %v384
        %v673 = vunpack.c.h.b16 %v384
        %v674 = vunpack.c.l.b16 %v385
        %v675 = vunpack.c.h.b16 %v385
        %v676 = vunpack.c.l.b16 %v386
        %v677 = vunpack.c.h.b16 %v386
        %v678 = vunpack.c.l.b16 %v387
        %v679 = vunpack.c.h.b16 %v387
        %v680 = vunpack.c.l.b16 %v388
        %v681 = vunpack.c.h.b16 %v388
        %v682 = vunpack.c.l.b16 %v389
        %v683 = vunpack.c.h.b16 %v389
        %v684 = vunpack.c.l.b16 %v390
        %v685 = vunpack.c.h.b16 %v390
        %v686 = vunpack.c.l.b16 %v391
        %v687 = vunpack.c.h.b16 %v391
        %v688 = vunpack.c.l.b16 %v392
        %v689 = vunpack.c.h.b16 %v392
        %v690 = vunpack.c.l.b16 %v393
        %v691 = vunpack.c.h.b16 %v393
        %v692 = vunpack.c.l.b16 %v394
        %v693 = vunpack.c.h.b16 %v394
        %v694 = vunpack.c.l.b16 %v395
        %v695 = vunpack.c.h.b16 %v395
        %v696 = vunpack.c.l.b16 %v396
        %v697 = vunpack.c.h.b16 %v396
        %v698 = vunpack.c.l.b16 %v397
        %v699 = vunpack.c.h.b16 %v397
        %v700 = vunpack.c.l.b16 %v398
        %v701 = vunpack.c.h.b16 %v398
        %v702 = vunpack.c.l.b16 %v399
        %v703 = vunpack.c.h.b16 %v399
        %v704 = vunpack.c.l.b16 %v400
        %v705 = vunpack.c.h.b16 %v400
        %v706 = vunpack.c.l.b16 %v401
        %v707 = vunpack.c.h.b16 %v401
        %v708 = vunpack.c.l.b16 %v402
        %v709 = vunpack.c.h.b16 %v402
        %v710 = vunpack.c.l.b16 %v403
        %v711 = vunpack.c.h.b16 %v403
        %v712 = vunpack.c.l.b16 %v404
        %v713 = vunpack.c.h.b16 %v404
        %v714 = vunpack.c.l.b16 %v405
        %v715 = vunpack.c.h.b16 %v405
        %v716 = vunpack.c.l.b16 %v406
        %v717 = vunpack.c.h.b16 %v406
        %v718 = vunpack.c.l.b16 %v407
        %v719 = vunpack.c.h.b16 %v407
        %v720 = vunpack.c.l.b16 %v408
        %v721 = vunpack.c.h.b16 %v408
        %v722 = vunpack.c.l.b16 %v409
        %v723 = vunpack.c.h.b16 %v409
        %v724 = vunpack.c.l.b16 %v410
        %v725 = vunpack.c.h.b16 %v410
        %v726 = vunpack.c.l.b16 %v411
        %v727 = vunpack.c.h.b16 %v411
        %v728 = vunpack.c.l.b16 %v412
        %v729 = vunpack.c.h.b16 %v412
        %v730 = vunpack.c.l.b16 %v413
        %v731 = vunpack.c.h.b16 %v413
        %v732 = vunpack.c.l.b16 %v414
        %v733 = vunpack.c.h.b16 %v414
        %v734 = vunpack.c.l.b16 %v415
        %v735 = vunpack.c.h.b16 %v415
        %v736 = vunpack.c.l.b16 %v416
        %v737 = vunpack.c.h.b16 %v416
        %v738 = vunpack.c.l.b16 %v417
        %v739 = vunpack.c.h.b16 %v417
        %v740 = vunpack.c.l.b16 %v418
        %v741 = vunpack.c.h.b16 %v418
        %v742 = vunpack.c.l.b16 %v419
        %v743 = vunpack.c.h.b16 %v419
        %v744 = vunpack.c.l.b16 %v420
        %v745 = vunpack.c.h.b16 %v420
        %v746 = vunpack.c.l.b16 %v421
        %v747 = vunpack.c.h.b16 %v421
        %v748 = vunpack.c.l.b16 %v422
        %v749 = vunpack.c.h.b16 %v422
        %v750 = vunpack.c.l.b16 %v423
        %v751 = vunpack.c.h.b16 %v423
        %v752 = vunpack.c.l.b16 %v424
        %v753 = vunpack.c.h.b16 %v424
        %v754 = vunpack.c.l.b16 %v425
        %v755 = vunpack.c.h.b16 %v425
        %v756 = vunpack.c.l.b16 %v426
        %v757 = vunpack.c.h.b16 %v426
        %v758 = vunpack.c.l.b16 %v427
        %v759 = vunpack.c.h.b16 %v427
        %v760 = vunpack.c.l.b16 %v428
        %v761 = vunpack.c.h.b16 %v428
        %v762 = vunpack.c.l.b16 %v429
        %v763 = vunpack.c.h.b16 %v429
        %v764 = vunpack.c.l.b16 %v430
        %v765 = vunpack.c.h.b16 %v430
        %v766 = vunpack.c.l.b16 %v431
        %v767 = vunpack.c.h.b16 %v431
        %v768 = vunpack.c.l.b16 %v432
        %v769 = vunpack.c.h.b16 %v432
        %v770 = vunpack.c.l.b16 %v433
        %v771 = vunpack.c.h.b16 %v433
        %v772 = vunpack.c.l.b16 %v434
        %v773 = vunpack.c.h.b16 %v434
        %v774 = vunpack.c.l.b16 %v435
        %v775 = vunpack.c.h.b16 %v435
        %v776 = vunpack.c.l.b16 %v436
        %v777 = vunpack.c.h.b16 %v436
        %v778 = vunpack.c.l.b16 %v437
        %v779 = vunpack.c.h.b16 %v437
        %v780 = vunpack.c.l.b16 %v438
        %v781 = vunpack.c.h.b16 %v438
        %v782 = vunpack.c.l.b16 %v439
        %v783 = vunpack.c.h.b16 %v439
        %v784 = vunpack.c.l.b16 %v440
        %v785 = vunpack.c.h.b16 %v440
        %v786 = vunpack.c.l.b16 %v441
        %v787 = vunpack.c.h.b16 %v441
        %v788 = vunpack.c.l.b16 %v442
        %v789 = vunpack.c.h.b16 %v442
        %v790 = vunpack.c.l.b16 %v443
        %v791 = vunpack.c.h.b16 %v443
        %v792 = vunpack.c.l.b16 %v444
        %v793 = vunpack.c.h.b16 %v444
        %v794 = vunpack.c.l.b16 %v445
        %v795 = vunpack.c.h.b16 %v445
        %v796 = vunpack.c.l.b16 %v446
        %v797 = vunpack.c.h.b16 %v446
        %v798 = vunpack.c.l.b16 %v447
        %v799 = vunpack.c.h.b16 %v447
        %v800 = vunpack.c.l.b16 %v448
        %v801 = vunpack.c.h.b16 %v448
        %v802 = vunpack.c.l.b16 %v449
        %v803 = vunpack.c.h.b16 %v449
        %v804 = vunpack.c.l.b16 %v450
        %v805 = vunpack.c.h.b16 %v450
        %v806 = vunpack.c.l.b16 %v451
        %v807 = vunpack.c.h.b16 %v451
        %v808 = vunpack.c.l.b16 %v452
        %v809 = vunpack.c.h.b16 %v452
        %v810 = vunpack.c.l.b16 %v453
        %v811 = vunpack.c.h.b16 %v453
        %v812 = vunpack.c.l.b16 %v454
        %v813 = vunpack.c.h.b16 %v454
        %v814 = vunpack.c.l.b16 %v455
        %v815 = vunpack.c.h.b16 %v455
        %v816 = vunpack.c.l.b16 %v456
        %v817 = vunpack.c.h.b16 %v456
        %v818 = vunpack.c.l.b16 %v457
        %v819 = vunpack.c.h.b16 %v457
        %v820 = vunpack.c.l.b16 %v458
        %v821 = vunpack.c.h.b16 %v458
        %v822 = vunpack.c.l.b16 %v459
        %v823 = vunpack.c.h.b16 %v459
        %v824 = vunpack.c.l.b16 %v460
        %v825 = vunpack.c.h.b16 %v460
        %v826 = vunpack.c.l.b16 %v461
        %v827 = vunpack.c.h.b16 %v461
        %v828 = vunpack.c.l.b16 %v462
        %v829 = vunpack.c.h.b16 %v462
        %v830 = vunpack.c.l.b16 %v463
        %v831 = vunpack.c.h.b16 %v463
        %v832 = vunpack.c.l.b16 %v464
        %v833 = vunpack.c.h.b16 %v464
        %v834 = vunpack.c.l.b16 %v465
        %v835 = vunpack.c.h.b16 %v465
        %v836 = vunpack.c.l.b16 %v466
        %v837 = vunpack.c.h.b16 %v466
        %v838 = vunpack.c.l.b16 %v467
        %v839 = vunpack.c.h.b16 %v467
        %v840 = vunpack.c.l.b16 %v468
        %v841 = vunpack.c.h.b16 %v468
        %v842 = vunpack.c.l.b16 %v469
        %v843 = vunpack.c.h.b16 %v469
        %v844 = vunpack.c.l.b16 %v470
        %v845 = vunpack.c.h.b16 %v470
        %v846 = vunpack.c.l.b16 %v471
        %v847 = vunpack.c.h.b16 %v471
        %v848 = vunpack.c.l.b16 %v472
        %v849 = vunpack.c.h.b16 %v472
        %v850 = vunpack.c.l.b16 %v473
        %v851 = vunpack.c.h.b16 %v473
        %v852 = vunpack.c.l.b16 %v474
        %v853 = vunpack.c.h.b16 %v474
        %v854 = vunpack.c.l.b16 %v475
        %v855 = vunpack.c.h.b16 %v475
        %v856 = vunpack.c.l.b16 %v476
        %v857 = vunpack.c.h.b16 %v476
        %v858 = vunpack.c.l.b16 %v477
        %v859 = vunpack.c.h.b16 %v477
        %v860 = vunpack.c.l.b16 %v478
        %v861 = vunpack.c.h.b16 %v478
        %v862 = vunpack.c.l.b16 %v479
        %v863 = vunpack.c.h.b16 %v479
        %v864 = vpack.c.b16 %v610, %v608
        %v865 = vpack.c.b16 %v611, %v609
        %v866 = vpack.c.b16 %v614, %v612
        %v867 = vpack.c.b16 %v615, %v613
        %v868 = vpack.c.b16 %v618, %v616
        %v869 = vpack.c.b16 %v619, %v617
        %v870 = vpack.c.b16 %v622, %v620
        %v871 = vpack.c.b16 %v623, %v621
        %v872 = vpack.c.b16 %v626, %v624
        %v873 = vpack.c.b16 %v627, %v625
        %v874 = vpack.c.b16 %v630, %v628
        %v875 = vpack.c.b16 %v631, %v629
        %v876 = vpack.c.b16 %v634, %v632
        %v877 = vpack.c.b16 %v635, %v633
        %v878 = vpack.c.b16 %v638, %v636
        %v879 = vpack.c.b16 %v639, %v637
        %v880 = vpack.c.b16 %v642, %v640
        %v881 = vpack.c.b16 %v643, %v641
        %v882 = vpack.c.b16 %v646, %v644
        %v883 = vpack.c.b16 %v647, %v645
        %v884 = vpack.c.b16 %v650, %v648
        %v885 = vpack.c.b16 %v651, %v649
        %v886 = vpack.c.b16 %v654, %v652
        %v887 = vpack.c.b16 %v655, %v653
        %v888 = vpack.c.b16 %v658, %v656
        %v889 = vpack.c.b16 %v659, %v657
        %v890 = vpack.c.b16 %v662, %v660
        %v891 = vpack.c.b16 %v663, %v661
        %v892 = vpack.c.b16 %v666, %v664
        %v893 = vpack.c.b16 %v667, %v665
        %v894 = vpack.c.b16 %v670, %v668
        %v895 = vpack.c.b16 %v671, %v669
        %v896 = vpack.c.b16 %v674, %v672
        %v897 = vpack.c.b16 %v675, %v673
        %v898 = vpack.c.b16 %v678, %v676
        %v899 = vpack.c.b16 %v679, %v677
        %v900 = vpack.c.b16 %v682, %v680
        %v901 = vpack.c.b16 %v683, %v681
        %v902 = vpack.c.b16 %v686, %v684
        %v903 = vpack.c.b16 %v687, %v685
        %v904 = vpack.c.b16 %v690, %v688
        %v905 = vpack.c.b16 %v691, %v689
        %v906 = vpack.c.b16 %v694, %v692
        %v907 = vpack.c.b16 %v695, %v693
        %v908 = vpack.c.b16 %v698, %v696
        %v909 = vpack.c.b16 %v699, %v697
        %v910 = vpack.c.b16 %v702, %v700
        %v911 = vpack.c.b16 %v703, %v701
        %v912 = vpack.c.b16 %v706, %v704
        %v913 = vpack.c.b16 %v707, %v705
        %v914 = vpack.c.b16 %v710, %v708
        %v915 = vpack.c.b16 %v711, %v709
        %v916 = vpack.c.b16 %v714, %v712
        %v917 = vpack.c.b16 %v715, %v713
        %v918 = vpack.c.b16 %v718, %v716
        %v919 = vpack.c.b16 %v719, %v717
        %v920 = vpack.c.b16 %v722, %v720
        %v921 = vpack.c.b16 %v723, %v721
        %v922 = vpack.c.b16 %v726, %v724
        %v923 = vpack.c.b16 %v727, %v725
        %v924 = vpack.c.b16 %v730, %v728
        %v925 = vpack.c.b16 %v731, %v729
        %v926 = vpack.c.b16 %v734, %v732
        %v927 = vpack.c.b16 %v735, %v733
        %v928 = vpack.c.b16 %v738, %v736
        %v929 = vpack.c.b16 %v739, %v737
        %v930 = vpack.c.b16 %v742, %v740
        %v931 = vpack.c.b16 %v743, %v741
        %v932 = vpack.c.b16 %v746, %v744
        %v933 = vpack.c.b16 %v747, %v745
        %v934 = vpack.c.b16 %v750, %v748
        %v935 = vpack.c.b16 %v751, %v749
        %v936 = vpack.c.b16 %v754, %v752
        %v937 = vpack.c.b16 %v755, %v753
        %v938 = vpack.c.b16 %v758, %v756
        %v939 = vpack.c.b16 %v759, %v757
        %v940 = vpack.c.b16 %v762, %v760
        %v941 = vpack.c.b16 %v763, %v761
        %v942 = vpack.c.b16 %v766, %v764
        %v943 = vpack.c.b16 %v767, %v765
        %v944 = vpack.c.b16 %v770, %v768
        %v945 = vpack.c.b16 %v771, %v769
        %v946 = vpack.c.b16 %v774, %v772
        %v947 = vpack.c.b16 %v775, %v773
        %v948 = vpack.c.b16 %v778, %v776
        %v949 = vpack.c.b16 %v779, %v777
        %v950 = vpack.c.b16 %v782, %v780
        %v951 = vpack.c.b16 %v783, %v781
        %v952 = vpack.c.b16 %v786, %v784
        %v953 = vpack.c.b16 %v787, %v785
        %v954 = vpack.c.b16 %v790, %v788
        %v955 = vpack.c.b16 %v791, %v789
        %v956 = vpack.c.b16 %v794, %v792
        %v957 = vpack.c.b16 %v795, %v793
        %v958 = vpack.c.b16 %v798, %v796
        %v959 = vpack.c.b16 %v799, %v797
        %v960 = vpack.c.b16 %v802, %v800
        %v961 = vpack.c.b16 %v803, %v801
        %v962 = vpack.c.b16 %v806, %v804
        %v963 = vpack.c.b16 %v807, %v805
        %v964 = vpack.c.b16 %v810, %v808
        %v965 = vpack.c.b16 %v811, %v809
        %v966 = vpack.c.b16 %v814, %v812
        %v967 = vpack.c.b16 %v815, %v813
        %v968 = vpack.c.b16 %v818, %v816
        %v969 = vpack.c.b16 %v819, %v817
        %v970 = vpack.c.b16 %v822, %v820
        %v971 = vpack.c.b16 %v823, %v821
        %v972 = vpack.c.b16 %v826, %v824
        %v973 = vpack.c.b16 %v827, %v825
        %v974 = vpack.c.b16 %v830, %v828
        %v975 = vpack.c.b16 %v831, %v829
        %v976 = vpack.c.b16 %v834, %v832
        %v977 = vpack.c.b16 %v835, %v833
        %v978 = vpack.c.b16 %v838, %v836
        %v979 = vpack.c.b16 %v839, %v837
        %v980 = vpack.c.b16 %v842, %v840
        %v981 = vpack.c.b16 %v843, %v841
        %v982 = vpack.c.b16 %v846, %v844
        %v983 = vpack.c.b16 %v847, %v845
        %v984 = vpack.c.b16 %v850, %v848
        %v985 = vpack.c.b16 %v851, %v849
        %v986 = vpack.c.b16 %v854, %v852
        %v987 = vpack.c.b16 %v855, %v853
        %v988 = vpack.c.b16 %v858, %v856
        %v989 = vpack.c.b16 %v859, %v857
        %v990 = vpack.c.b16 %v862, %v860
        %v991 = vpack.c.b16 %v863, %v861
        %1120 = vmatprep.subr.bf16.mxu0 %v865
        %1121 = vmatpush1.bf16.msra.mxu0 %v864
        %1122 = vmatprep.subr.bf16.mxu0 %v867
        %1123 = vmatpush1.bf16.msra.mxu0 %v866
        %1124 = vmatprep.subr.bf16.mxu0 %v869
        %1125 = vmatpush1.bf16.msra.mxu0 %v868
        %1126 = vmatprep.subr.bf16.mxu0 %v871
        %1127 = vmatpush1.bf16.msra.mxu0 %v870
        %1128 = vmatprep.subr.bf16.mxu0 %v873
        %1129 = vmatpush1.bf16.msra.mxu0 %v872
        %1130 = vmatprep.subr.bf16.mxu0 %v875
        %1131 = vmatpush1.bf16.msra.mxu0 %v874
        %1132 = vmatprep.subr.bf16.mxu0 %v877
        %1133 = vmatpush1.bf16.msra.mxu0 %v876
        %1134 = vmatprep.subr.bf16.mxu0 %v879
        %1135 = vmatpush1.bf16.msra.mxu0 %v878
        %1136 = vmatprep.subr.bf16.mxu0 %v881
        %1137 = vmatpush1.bf16.msra.mxu0 %v880
        %1138 = vmatprep.subr.bf16.mxu0 %v883
        %1139 = vmatpush1.bf16.msra.mxu0 %v882
        %1140 = vmatprep.subr.bf16.mxu0 %v885
        %1141 = vmatpush1.bf16.msra.mxu0 %v884
        %1142 = vmatprep.subr.bf16.mxu0 %v887
        %1143 = vmatpush1.bf16.msra.mxu0 %v886
        %1144 = vmatprep.subr.bf16.mxu0 %v889
        %1145 = vmatpush1.bf16.msra.mxu0 %v888
        %1146 = vmatprep.subr.bf16.mxu0 %v891
        %1147 = vmatpush1.bf16.msra.mxu0 %v890
        %1148 = vmatprep.subr.bf16.mxu0 %v893
        %1149 = vmatpush1.bf16.msra.mxu0 %v892
        %1150 = vmatprep.subr.bf16.mxu0 %v895
        %1151 = vmatpush1.bf16.msra.mxu0 %v894
        %1152 = vmatprep.mubr.bf16.mxu0 %v345
        %1153 = vmatmul.mubr.bf16.gmra.mrb[0].mxu0 %v344
        %v1154 = vpop.f32.mrb[0].mxu0
        %v1155 = vadd.f32 0.0, %v1154
        %v1156 = vpop.f32.mrb[0].mxu0
        %v1157 = vadd.f32 0.0, %v1156
        %v1158 = vpop.f32.mrb[0].mxu0
        %v1159 = vpop.f32.mrb[0].mxu0
        %1160 = vdwg.mxu0
        %1161 = vmatprep.subr.bf16.mxu0 %v897
        %1162 = vmatpush1.bf16.msra.mxu0 %v896
        %1163 = vmatprep.subr.bf16.mxu0 %v899
        %1164 = vmatpush1.bf16.msra.mxu0 %v898
        %1165 = vmatprep.subr.bf16.mxu0 %v901
        %1166 = vmatpush1.bf16.msra.mxu0 %v900
        %1167 = vmatprep.subr.bf16.mxu0 %v903
        %1168 = vmatpush1.bf16.msra.mxu0 %v902
        %1169 = vmatprep.subr.bf16.mxu0 %v905
        %1170 = vmatpush1.bf16.msra.mxu0 %v904
        %1171 = vmatprep.subr.bf16.mxu0 %v907
        %1172 = vmatpush1.bf16.msra.mxu0 %v906
        %1173 = vmatprep.subr.bf16.mxu0 %v909
        %1174 = vmatpush1.bf16.msra.mxu0 %v908
        %1175 = vmatprep.subr.bf16.mxu0 %v911
        %1176 = vmatpush1.bf16.msra.mxu0 %v910
        %1177 = vmatprep.subr.bf16.mxu0 %v913
        %1178 = vmatpush1.bf16.msra.mxu0 %v912
        %1179 = vmatprep.subr.bf16.mxu0 %v915
        %1180 = vmatpush1.bf16.msra.mxu0 %v914
        %1181 = vmatprep.subr.bf16.mxu0 %v917
        %1182 = vmatpush1.bf16.msra.mxu0 %v916
        %1183 = vmatprep.subr.bf16.mxu0 %v919
        %1184 = vmatpush1.bf16.msra.mxu0 %v918
        %1185 = vmatprep.subr.bf16.mxu0 %v921
        %1186 = vmatpush1.bf16.msra.mxu0 %v920
        %1187 = vmatprep.subr.bf16.mxu0 %v923
        %1188 = vmatpush1.bf16.msra.mxu0 %v922
        %1189 = vmatprep.subr.bf16.mxu0 %v925
        %1190 = vmatpush1.bf16.msra.mxu0 %v924
        %1191 = vmatprep.subr.bf16.mxu0 %v927
        %1192 = vmatpush1.bf16.msra.mxu0 %v926
        %1193 = vmatprep.mubr.bf16.mxu0 %v347
        %1194 = vmatmul.mubr.bf16.gmra.mrb[0].mxu0 %v346
        %v1195 = vpop.f32.mrb[0].mxu0
        %v1196 = vadd.f32 %v1155, %v1195
        %v1197 = vpop.f32.mrb[0].mxu0
        %v1198 = vadd.f32 %v1157, %v1197
        %v1199 = vpop.f32.mrb[0].mxu0
        %v1200 = vpop.f32.mrb[0].mxu0
        %1201 = vdwg.mxu0
        %1202 = vmatprep.subr.bf16.mxu0 %v929
        %1203 = vmatpush1.bf16.msra.mxu0 %v928
        %1204 = vmatprep.subr.bf16.mxu0 %v931
        %1205 = vmatpush1.bf16.msra.mxu0 %v930
        %1206 = vmatprep.subr.bf16.mxu0 %v933
        %1207 = vmatpush1.bf16.msra.mxu0 %v932
        %1208 = vmatprep.subr.bf16.mxu0 %v935
        %1209 = vmatpush1.bf16.msra.mxu0 %v934
        %1210 = vmatprep.subr.bf16.mxu0 %v937
        %1211 = vmatpush1.bf16.msra.mxu0 %v936
        %1212 = vmatprep.subr.bf16.mxu0 %v939
        %1213 = vmatpush1.bf16.msra.mxu0 %v938
        %1214 = vmatprep.subr.bf16.mxu0 %v941
        %1215 = vmatpush1.bf16.msra.mxu0 %v940
        %1216 = vmatprep.subr.bf16.mxu0 %v943
        %1217 = vmatpush1.bf16.msra.mxu0 %v942
        %1218 = vmatprep.subr.bf16.mxu0 %v945
        %1219 = vmatpush1.bf16.msra.mxu0 %v944
        %1220 = vmatprep.subr.bf16.mxu0 %v947
        %1221 = vmatpush1.bf16.msra.mxu0 %v946
        %1222 = vmatprep.subr.bf16.mxu0 %v949
        %1223 = vmatpush1.bf16.msra.mxu0 %v948
        %1224 = vmatprep.subr.bf16.mxu0 %v951
        %1225 = vmatpush1.bf16.msra.mxu0 %v950
        %1226 = vmatprep.subr.bf16.mxu0 %v953
        %1227 = vmatpush1.bf16.msra.mxu0 %v952
        %1228 = vmatprep.subr.bf16.mxu0 %v955
        %1229 = vmatpush1.bf16.msra.mxu0 %v954
        %1230 = vmatprep.subr.bf16.mxu0 %v957
        %1231 = vmatpush1.bf16.msra.mxu0 %v956
        %1232 = vmatprep.subr.bf16.mxu0 %v959
        %1233 = vmatpush1.bf16.msra.mxu0 %v958
        %1234 = vmatprep.mubr.bf16.mxu0 %v349
        %1235 = vmatmul.mubr.bf16.gmra.mrb[0].mxu0 %v348
        %v1236 = vpop.f32.mrb[0].mxu0
        %v1237 = vadd.f32 %v1196, %v1236
        %v1238 = vpop.f32.mrb[0].mxu0
        %v1239 = vadd.f32 %v1198, %v1238
        %v1240 = vpop.f32.mrb[0].mxu0
        %v1241 = vpop.f32.mrb[0].mxu0
        %1242 = vdwg.mxu0
        %1243 = vmatprep.subr.bf16.mxu0 %v961
        %1244 = vmatpush1.bf16.msra.mxu0 %v960
        %1245 = vmatprep.subr.bf16.mxu0 %v963
        %1246 = vmatpush1.bf16.msra.mxu0 %v962
        %1247 = vmatprep.subr.bf16.mxu0 %v965
        %1248 = vmatpush1.bf16.msra.mxu0 %v964
        %1249 = vmatprep.subr.bf16.mxu0 %v967
        %1250 = vmatpush1.bf16.msra.mxu0 %v966
        %1251 = vmatprep.subr.bf16.mxu0 %v969
        %1252 = vmatpush1.bf16.msra.mxu0 %v968
        %1253 = vmatprep.subr.bf16.mxu0 %v971
        %1254 = vmatpush1.bf16.msra.mxu0 %v970
        %1255 = vmatprep.subr.bf16.mxu0 %v973
        %1256 = vmatpush1.bf16.msra.mxu0 %v972
        %1257 = vmatprep.subr.bf16.mxu0 %v975
        %1258 = vmatpush1.bf16.msra.mxu0 %v974
        %1259 = vmatprep.subr.bf16.mxu0 %v977
        %1260 = vmatpush1.bf16.msra.mxu0 %v976
        %1261 = vmatprep.subr.bf16.mxu0 %v979
        %1262 = vmatpush1.bf16.msra.mxu0 %v978
        %1263 = vmatprep.subr.bf16.mxu0 %v981
        %1264 = vmatpush1.bf16.msra.mxu0 %v980
        %1265 = vmatprep.subr.bf16.mxu0 %v983
        %1266 = vmatpush1.bf16.msra.mxu0 %v982
        %1267 = vmatprep.subr.bf16.mxu0 %v985
        %1268 = vmatpush1.bf16.msra.mxu0 %v984
        %1269 = vmatprep.subr.bf16.mxu0 %v987
        %1270 = vmatpush1.bf16.msra.mxu0 %v986
        %1271 = vmatprep.subr.bf16.mxu0 %v989
        %1272 = vmatpush1.bf16.msra.mxu0 %v988
        %1273 = vmatprep.subr.bf16.mxu0 %v991
        %1274 = vmatpush1.bf16.msra.mxu0 %v990
        %1275 = vmatprep.mubr.bf16.mxu0 %v351
        %1276 = vmatmul.mubr.bf16.gmra.mrb[0].mxu0 %v350
        %v1277 = vpop.f32.mrb[0].mxu0
        %v1278 = vadd.f32 %v1237, %v1277
        %v1279 = vpop.f32.mrb[0].mxu0
        %v1280 = vadd.f32 %v1239, %v1279
        %v1281 = vpop.f32.mrb[0].mxu0
        %v1282 = vpop.f32.mrb[0].mxu0
        %1283 = vdwg.mxu0
        %v1286 = vcombine.low %v1278, %v1280
        %v1288 = vunpack.c.l.s4 1983009808
        %v1289 = vunpack.c.0.s8 %v1288
        %v1290 = vlaneseq
        %v1291 = vshrl.u32 %v1290, 7
        %v1292 = vsub.s32 %v1289, %v1291
        %v1293 = vrot.slane %v1286, %v1292
        %v1295 = vadd.f32 %v297, %v1293
        %1296 = vst [vmem:[%s254] sm:$0xf] %v1295
        %s1297 = sand.u32 %s131, 1
        %s1298 = scalar_lea.sflag [#allocation4], %s1297
        %s1299 = sand.u32 %s131, 1
        %s1300 = smul.addr %s1299, 4
        %s1301 = scalar_lea.vmem [#allocation5], %s1300
        // Predicated region
        $region41: #{linear_forward.1} parent=31 // pred_check
          %p1302 = pneg %p141
        $region42: #{linear_forward.1} parent=31 // pred_check_branch
          %1304 = sbr.rel (%p1302) target = $region44
        $region43: #{linear_forward.1} parent=31 // pred_region
          %s1305 = smul.u32 2, %s26
          %s1307 = ssub.s32 64, 64
          %1308 = vsyncadd %s1298, %s1307
          %s1309 = smul.addr %s25, 4
          %s1310 = sadd.s32 %s1305, %s1309
          %s1311 = smul.addr %s1310, 32
          %s1312 = scalar_lea.hbm %s3, %s1311
          %s1314 = sshll.u32 %s1301, 4
          %s1315 = int_to_ptr.vmem [resolvable:$true] %s1314
          %1317 = dma.vmem_to_hbm [thread:$0]  %s1315, 64, %s1312, %s1298
        $region44: #{linear_forward.1} parent=31 // pred_fallthru
          _
      $region32: #{linear_forward.1} parent=5 // pred_fallthru
        _
      %p1318 = scmp.le.s32.totalorder 2, %s15
      // Predicated region
      $region45: #{linear_forward.1} parent=5 // pred_check
        %p1319 = pneg %p1318
      $region46: #{linear_forward.1} parent=5 // pred_check_branch
        %1321 = sbr.rel (%p1319) target = $region48
      $region47: #{linear_forward.1} parent=5 // pred_region
        %s1322 = ssub.s32 %s15, 2
        // Predicated region
        $region49: #{linear_forward.1} parent=47 // pred_check
          %p1323 = pneg %p147
        $region50: #{linear_forward.1} parent=47 // pred_check_branch
          %1325 = sbr.rel (%p1323) target = $region52
        $region51: #{linear_forward.1} parent=47 // pred_region
          %s1326 = sand.u32 %s132, 1
          %s1327 = scalar_lea.sflag [#allocation4], %s1326
          %s1328 = sand.u32 %s132, 1
          %s1329 = smul.addr %s1328, 4
          %s1330 = scalar_lea.vmem [#allocation5], %s1329
          %1331 = dma.done %s1327, 64
        $region52: #{linear_forward.1} parent=47 // pred_fallthru
          _
      $region48: #{linear_forward.1} parent=5 // pred_fallthru
        _
    $region6: #{linear_forward.1} parent=1 // loop_footer
      %s19 = sadd.s32 1, %s15
    $region7: #{linear_forward.1} parent=1 // loop_footer_branch
      %14 = sbr.rel target = $region3
    $region8: #{linear_forward.1} parent=1 // loop_exit
      _
    %1332 = vsyncpa [#allocation3], 1
    %s1333 = scalar_lea.sflag [#allocation3], 1
    %1334 = vsyncpa %s1333, 1
    %1335 = vsyncpa [#allocation4], 1
    %s1336 = scalar_lea.sflag [#allocation4], 1
    %1337 = vsyncpa %s1336, 1

</llo_original>
